<compile_context>
chip_gen: v5e
topology: v5e:2x2
jax: 0.10.0
libtpu: 0.0.40
codegen_flags: <defaults>
</compile_context>

<pallas_src>
import numpy as np
import jax
import jax.numpy as jnp
from jax.experimental import pallas as pl
from jax.experimental.pallas import tpu as pltpu


# ----------------------------- fused Pallas kernel -----------------------------

def gat2_fused_kernel(x_ref, bias_ref,
                      w1_ref, b1_ref,
                      w2_ref, b2_ref,
                      g_ref,
                      fw1s_ref, fw1d_ref, fb1_ref,
                      fw2_ref, fb2_ref,
                      out_ref):
    hid = b1_ref.shape[-1]
    # Additive attention mask (0 on edges incl. self-loops, -1e30 elsewhere),
    # loaded once and shared by both GAT layers.
    bias = bias_ref[...]                                                  # (N, N) f32

    def gat_layer(x, wext_ref, b_ref):
        # One MXU matmul yields h and both attention scores:
        # wext = [W | W@a_src | W@a_dst]  ->  h_ext = [h | s | d]
        h_ext = jnp.dot(x, wext_ref[...], preferred_element_type=jnp.float32)  # (N, H+2)
        h = h_ext[:, :hid]                                                # (N, H)
        s = h_ext[:, hid:hid + 1]                                         # (N, 1) source score
        d = h_ext[:, hid + 1:hid + 2]                                     # (N, 1) dest score
        e = d + jnp.transpose(s)                                          # e[i, j] = d_i + s_j
        e = jnp.maximum(e, 0.2 * e)                                       # LeakyReLU(0.2)
        e = e + bias                                                      # mask non-edges: single add
        m = jnp.max(e, axis=1, keepdims=True)                             # finite: self-loops
        p = jnp.exp(e - m)                                                # masked entries -> 0
        denom = jnp.sum(p, axis=1, keepdims=True)                         # > 0 thanks to self-loops
        # Deferred normalization: matmul the UNNORMALIZED scores, then scale by a
        # per-row reciprocal.  approx reciprocal (EUP slot) + one Newton step.
        r = pl.reciprocal(denom, approx=True)
        r = r * (2.0 - denom * r)                                         # ~1e-7 rel error
        out = jnp.dot(p, h, preferred_element_type=jnp.float32) * r + b_ref[...]
        # ELU (clamped arg so the dead branch never overflows)
        return jnp.where(out > 0, out, jnp.exp(jnp.minimum(out, 0.0)) - 1.0)

    x1 = gat_layer(x_ref[...], w1_ref, b1_ref)
    x2 = gat_layer(x1, w2_ref, b2_ref)

    # Edge head, reordered: apply the split fc1 to the N node rows first
    # (2*N*H^2 FLOPs), then gather+sum with ONE (E, 2N) @ (2N, H) one-hot matmul.
    zs = jnp.dot(x2, fw1s_ref[...], preferred_element_type=jnp.float32)   # (N, H)
    zd = jnp.dot(x2, fw1d_ref[...], preferred_element_type=jnp.float32)   # (N, H)
    z = jnp.concatenate([zs, zd], axis=0)                                 # (2N, H)
    hfc = jnp.dot(g_ref[...], z, preferred_element_type=jnp.float32) + fb1_ref[...]
    hfc = jnp.maximum(hfc, 0.0)                                           # ReLU
    o = jnp.dot(hfc, fw2_ref[...], preferred_element_type=jnp.float32) + fb2_ref[...]
    mo = jnp.max(o, axis=1, keepdims=True)                                # log_softmax
    lse = jnp.log(jnp.sum(jnp.exp(o - mo), axis=1, keepdims=True)) + mo
    out_ref[...] = o - lse


# ------------------------------ JAX wrappers -------------------------------

def build_graph(edge_index_np, num_nodes):
    """Host-side (numpy) graph structure, built once per graph (no per-forward
    O(N^2) XLA scatter).  Additive f32 attention bias + combined one-hot gather."""
    src = np.asarray(edge_index_np[0], dtype=np.int64)
    dst = np.asarray(edge_index_np[1], dtype=np.int64)
    num_edges = src.shape[0]
    # Dense mask collapses duplicate edges / pre-existing self-loops, which PyG
    # GATConv would count separately -- guard against that.
    assert len({(int(s), int(d)) for s, d in zip(src, dst)}) == num_edges, \
        "duplicate edges not supported by dense-mask formulation"
    assert not np.any(src == dst), "pre-existing self-loops not supported"
    # additive attention bias: 0 on edges (+self-loops), -1e30 elsewhere
    bias = np.full((num_nodes, num_nodes), -1e30, np.float32)
    bias[dst, src] = 0.0
    np.fill_diagonal(bias, 0.0)                  # self-loops (PyG default)
    # combined one-hot gather [gsrc | gdst]: one (E, 2N) @ (2N, H) MXU matmul
    g = np.zeros((num_edges, 2 * num_nodes), np.float32)
    g[np.arange(num_edges), src] = 1.0
    g[np.arange(num_edges), num_nodes + dst] = 1.0
    # TODO(synk): at non-toy E/N, replace with scalar-prefetched edge indices
    #   (PrefetchScalarGridSpec + per-row gather) -- one-hot gather is O(E*N).
    return jnp.asarray(bias), jnp.asarray(g)


def prepare_params(params, hid):
    """One-time repack: fold a_src/a_dst into the weight matrices and split fc1."""
    w1_ext = jnp.concatenate(
        [params["w1"], params["w1"] @ params["as1"].T, params["w1"] @ params["ad1"].T],
        axis=1)                                                           # (F, H+2)
    w2_ext = jnp.concatenate(
        [params["w2"], params["w2"] @ params["as2"].T, params["w2"] @ params["ad2"].T],
        axis=1)                                                           # (H, H+2)
    return {
        "w1": w1_ext, "b1": params["b1"],
        "w2": w2_ext, "b2": params["b2"],
        "fw1s": params["fw1"][:hid], "fw1d": params["fw1"][hid:],         # split fc1
        "fb1": params["fb1"], "fw2": params["fw2"], "fb2": params["fb2"],
    }


def gat2_forward(x, graph, kp):
    """Full GAT2.forward as a single fused pallas_call."""
    bias, g = graph
    num_edges = g.shape[0]
    num_classes = kp["fw2"].shape[1]
    args = (x, bias,
            kp["w1"], kp["b1"],
            kp["w2"], kp["b2"],
            g,
            kp["fw1s"], kp["fw1d"], kp["fb1"],
            kp["fw2"], kp["fb2"])
    # TODO(synk): at scale, pad num_classes to a lane-dense width (or emit (C, E))
    #   to avoid masked vst.msk partial stores on the (E, 4) output.
    return pl.pallas_call(
        gat2_fused_kernel,
        out_shape=jax.ShapeDtypeStruct((num_edges, num_classes), jnp.float32),
        in_specs=[pl.BlockSpec(memory_space=pltpu.MemorySpace.VMEM)] * len(args),
        out_specs=pl.BlockSpec(memory_space=pltpu.MemorySpace.VMEM),
    )(*args)


# --------------------------- pure-JAX reference ----------------------------

def _ref_gat_layer(x, w, a_src, a_dst, b, mask):
    h = x @ w
    s = jnp.sum(h * a_src, axis=1, keepdims=True)
    d = jnp.sum(h * a_dst, axis=1, keepdims=True)
    e = d + s.T
    e = jnp.where(e > 0, e, 0.2 * e)
    e = jnp.where(mask > 0, e, -1e30)
    m = jnp.max(e, axis=1, keepdims=True)
    p = jnp.exp(e - m) * mask
    attn = p / jnp.sum(p, axis=1, keepdims=True)
    out = attn @ h + b
    return jnp.where(out > 0, out, jnp.exp(jnp.minimum(out, 0.0)) - 1.0)


def _ref_forward(x, edge_index, params):
    n = x.shape[0]
    src, dst = edge_index[0], edge_index[1]
    mask = jnp.zeros((n, n), jnp.float32).at[dst, src].set(1.0)
    mask = jnp.maximum(mask, jnp.eye(n, dtype=jnp.float32))
    x1 = _ref_gat_layer(x, params["w1"], params["as1"], params["ad1"], params["b1"], mask)
    x2 = _ref_gat_layer(x1, params["w2"], params["as2"], params["ad2"], params["b2"], mask)
    ef = jnp.concatenate([x2[src], x2[dst]], axis=1)
    h = jnp.maximum(ef @ params["fw1"] + params["fb1"], 0.0)
    o = h @ params["fw2"] + params["fb2"]
    return o - jax.nn.logsumexp(o, axis=1, keepdims=True)


# ---------------------------------- main -----------------------------------

if __name__ == "__main__":
    N, F_IN, HID, C = 16, 8, 16, 4   # nodes, num_features, hidden (=16 in module), num_classes

    key = jax.random.PRNGKey(0)
    keys = jax.random.split(key, 12)

    # deterministic synthetic parameters (shapes per GAT2.__init__, heads=1)
    params = {
        "w1":  0.3 * jax.random.normal(keys[0], (F_IN, HID), jnp.float32),
        "as1": 0.3 * jax.random.normal(keys[1], (1, HID), jnp.float32),
        "ad1": 0.3 * jax.random.normal(keys[2], (1, HID), jnp.float32),
        "b1":  0.1 * jax.random.normal(keys[3], (1, HID), jnp.float32),
        "w2":  0.3 * jax.random.normal(keys[4], (HID, HID), jnp.float32),
        "as2": 0.3 * jax.random.normal(keys[5], (1, HID), jnp.float32),
        "ad2": 0.3 * jax.random.normal(keys[6], (1, HID), jnp.float32),
        "b2":  0.1 * jax.random.normal(keys[7], (1, HID), jnp.float32),
        "fw1": 0.3 * jax.random.normal(keys[8], (2 * HID, HID), jnp.float32),
        "fb1": 0.1 * jax.random.normal(keys[9], (1, HID), jnp.float32),
        "fw2": 0.3 * jax.random.normal(keys[10], (HID, C), jnp.float32),
        "fb2": 0.1 * jax.random.normal(keys[11], (1, C), jnp.float32),
    }

    # node features
    x = jax.random.normal(jax.random.PRNGKey(42), (N, F_IN), jnp.float32)

    # deterministic directed edge list (no duplicates, no self-loops): E = 2N = 32
    edges = []
    for i in range(N):
        edges.append((i, (i + 1) % N))
        edges.append((i, (i + 3) % N))
    edge_index_np = np.array(edges, dtype=np.int32).T          # (2, E): [src; dst]
    E = edge_index_np.shape[1]

    graph = build_graph(edge_index_np, N)                      # host-side, once per graph
    kparams = prepare_params(params, HID)                      # once per parameter set

    fwd = jax.jit(gat2_forward)
    out = jax.block_until_ready(fwd(x, graph, kparams))

    ref = _ref_forward(x, jnp.asarray(edge_index_np), params)
    assert out.shape == (E, C), out.shape
    assert bool(jnp.all(jnp.isfinite(out)))
    assert bool(jnp.allclose(out, ref, atol=1e-4, rtol=1e-4)), "mismatch vs reference"

    print("KERNEL_OK")
</pallas_src>

<mosaic_0001>
module attributes {stable_mosaic.version = 11 : i64} {
  func.func @gat2_fused_kernel(%arg0: memref<16x8xf32, #tpu.memory_space<vmem>>, %arg1: memref<16x16xf32, #tpu.memory_space<vmem>>, %arg2: memref<8x18xf32, #tpu.memory_space<vmem>>, %arg3: memref<1x16xf32, #tpu.memory_space<vmem>>, %arg4: memref<16x18xf32, #tpu.memory_space<vmem>>, %arg5: memref<1x16xf32, #tpu.memory_space<vmem>>, %arg6: memref<32x32xf32, #tpu.memory_space<vmem>>, %arg7: memref<16x16xf32, #tpu.memory_space<vmem>>, %arg8: memref<16x16xf32, #tpu.memory_space<vmem>>, %arg9: memref<1x16xf32, #tpu.memory_space<vmem>>, %arg10: memref<16x4xf32, #tpu.memory_space<vmem>>, %arg11: memref<1x4xf32, #tpu.memory_space<vmem>>, %arg12: memref<32x4xf32, #tpu.memory_space<vmem>>) attributes {dimension_semantics = [], scalar_prefetch = 0 : i64, scratch_operands = 0 : i64, tpu.core_type = #tpu.core_type<tc>} {
    %c0 = arith.constant 0 : index
    %c0_0 = arith.constant 0 : index
    %0 = vector.load %arg1[%c0, %c0_0] : memref<16x16xf32, #tpu.memory_space<vmem>>, vector<16x16xf32>
    %c0_1 = arith.constant 0 : index
    %c0_2 = arith.constant 0 : index
    %1 = vector.load %arg0[%c0_1, %c0_2] : memref<16x8xf32, #tpu.memory_space<vmem>>, vector<16x8xf32>
    %c0_3 = arith.constant 0 : index
    %c0_4 = arith.constant 0 : index
    %2 = vector.load %arg2[%c0_3, %c0_4] : memref<8x18xf32, #tpu.memory_space<vmem>>, vector<8x18xf32>
    %cst = arith.constant dense<0.000000e+00> : vector<16x18xf32>
    %3 = tpu.matmul %1, %2, %cst {dimension_numbers = #tpu.dot_dimension_numbers<[1], [0], [0], [1], [0, 0, 1, 1], [], []>} : vector<16x8xf32>, vector<8x18xf32>, vector<16x18xf32> -> vector<16x18xf32>
    %4 = vector.extract_strided_slice %3 {offsets = [0, 0], sizes = [16, 16], strides = [1, 1]} : vector<16x18xf32> to vector<16x16xf32>
    %5 = vector.extract_strided_slice %3 {offsets = [0, 16], sizes = [16, 1], strides = [1, 1]} : vector<16x18xf32> to vector<16x1xf32>
    %6 = vector.extract_strided_slice %3 {offsets = [0, 17], sizes = [16, 1], strides = [1, 1]} : vector<16x18xf32> to vector<16x1xf32>
    %7 = tpu.transpose %5, [1, 0] : vector<16x1xf32> -> vector<1x16xf32>
    %8 = vector.broadcast %6 : vector<16x1xf32> to vector<16x16xf32>
    %9 = vector.broadcast %7 : vector<1x16xf32> to vector<16x16xf32>
    %10 = arith.addf %8, %9 : vector<16x16xf32>
    %cst_5 = arith.constant 2.000000e-01 : f32
    %11 = vector.broadcast %cst_5 : f32 to vector<16x16xf32>
    %12 = arith.mulf %11, %10 : vector<16x16xf32>
    %13 = arith.maximumf %10, %12 : vector<16x16xf32>
    %14 = arith.addf %13, %0 : vector<16x16xf32>
    %cst_6 = arith.constant dense<0xFF800000> : vector<16xf32>
    %15 = vector.multi_reduction <maximumf>, %14, %cst_6 [1] : vector<16x16xf32> to vector<16xf32>
    %16 = vector.shape_cast %15 : vector<16xf32> to vector<16x1xf32>
    %17 = vector.broadcast %16 : vector<16x1xf32> to vector<16x16xf32>
    %18 = arith.subf %14, %17 : vector<16x16xf32>
    %19 = math.exp %18 : vector<16x16xf32>
    %cst_7 = arith.constant dense<0.000000e+00> : vector<16xf32>
    %20 = vector.multi_reduction <add>, %19, %cst_7 [1] : vector<16x16xf32> to vector<16xf32>
    %21 = vector.shape_cast %20 : vector<16xf32> to vector<16x1xf32>
    %22 = tpu.reciprocal %21 {approx = true} : vector<16x1xf32> -> vector<16x1xf32>
    %23 = arith.mulf %21, %22 : vector<16x1xf32>
    %cst_8 = arith.constant 2.000000e+00 : f32
    %24 = vector.broadcast %cst_8 : f32 to vector<16x1xf32>
    %25 = arith.subf %24, %23 : vector<16x1xf32>
    %26 = arith.mulf %22, %25 : vector<16x1xf32>
    %cst_9 = arith.constant dense<0.000000e+00> : vector<16x16xf32>
    %27 = tpu.matmul %19, %4, %cst_9 {dimension_numbers = #tpu.dot_dimension_numbers<[1], [0], [0], [1], [0, 0, 1, 1], [], []>} : vector<16x16xf32>, vector<16x16xf32>, vector<16x16xf32> -> vector<16x16xf32>
    %28 = vector.broadcast %26 : vector<16x1xf32> to vector<16x16xf32>
    %29 = arith.mulf %27, %28 : vector<16x16xf32>
    %c0_10 = arith.constant 0 : index
    %c0_11 = arith.constant 0 : index
    %30 = vector.load %arg3[%c0_10, %c0_11] : memref<1x16xf32, #tpu.memory_space<vmem>>, vector<1x16xf32>
    %31 = vector.broadcast %30 : vector<1x16xf32> to vector<16x16xf32>
    %32 = arith.addf %29, %31 : vector<16x16xf32>
    %cst_12 = arith.constant 0.000000e+00 : f32
    %33 = vector.broadcast %cst_12 : f32 to vector<16x16xf32>
    %34 = arith.cmpf ogt, %32, %33 : vector<16x16xf32>
    %cst_13 = arith.constant 0.000000e+00 : f32
    %35 = vector.broadcast %cst_13 : f32 to vector<16x16xf32>
    %36 = arith.minimumf %32, %35 : vector<16x16xf32>
    %37 = math.exp %36 : vector<16x16xf32>
    %cst_14 = arith.constant 1.000000e+00 : f32
    %38 = vector.broadcast %cst_14 : f32 to vector<16x16xf32>
    %39 = arith.subf %37, %38 : vector<16x16xf32>
    %40 = arith.select %34, %32, %39 : vector<16x16xi1>, vector<16x16xf32>
    %c0_15 = arith.constant 0 : index
    %c0_16 = arith.constant 0 : index
    %41 = vector.load %arg4[%c0_15, %c0_16] : memref<16x18xf32, #tpu.memory_space<vmem>>, vector<16x18xf32>
    %cst_17 = arith.constant dense<0.000000e+00> : vector<16x18xf32>
    %42 = tpu.matmul %40, %41, %cst_17 {dimension_numbers = #tpu.dot_dimension_numbers<[1], [0], [0], [1], [0, 0, 1, 1], [], []>} : vector<16x16xf32>, vector<16x18xf32>, vector<16x18xf32> -> vector<16x18xf32>
    %43 = vector.extract_strided_slice %42 {offsets = [0, 0], sizes = [16, 16], strides = [1, 1]} : vector<16x18xf32> to vector<16x16xf32>
    %44 = vector.extract_strided_slice %42 {offsets = [0, 16], sizes = [16, 1], strides = [1, 1]} : vector<16x18xf32> to vector<16x1xf32>
    %45 = vector.extract_strided_slice %42 {offsets = [0, 17], sizes = [16, 1], strides = [1, 1]} : vector<16x18xf32> to vector<16x1xf32>
    %46 = tpu.transpose %44, [1, 0] : vector<16x1xf32> -> vector<1x16xf32>
    %47 = vector.broadcast %45 : vector<16x1xf32> to vector<16x16xf32>
    %48 = vector.broadcast %46 : vector<1x16xf32> to vector<16x16xf32>
    %49 = arith.addf %47, %48 : vector<16x16xf32>
    %cst_18 = arith.constant 2.000000e-01 : f32
    %50 = vector.broadcast %cst_18 : f32 to vector<16x16xf32>
    %51 = arith.mulf %50, %49 : vector<16x16xf32>
    %52 = arith.maximumf %49, %51 : vector<16x16xf32>
    %53 = arith.addf %52, %0 : vector<16x16xf32>
    %cst_19 = arith.constant dense<0xFF800000> : vector<16xf32>
    %54 = vector.multi_reduction <maximumf>, %53, %cst_19 [1] : vector<16x16xf32> to vector<16xf32>
    %55 = vector.shape_cast %54 : vector<16xf32> to vector<16x1xf32>
    %56 = vector.broadcast %55 : vector<16x1xf32> to vector<16x16xf32>
    %57 = arith.subf %53, %56 : vector<16x16xf32>
    %58 = math.exp %57 : vector<16x16xf32>
    %cst_20 = arith.constant dense<0.000000e+00> : vector<16xf32>
    %59 = vector.multi_reduction <add>, %58, %cst_20 [1] : vector<16x16xf32> to vector<16xf32>
    %60 = vector.shape_cast %59 : vector<16xf32> to vector<16x1xf32>
    %61 = tpu.reciprocal %60 {approx = true} : vector<16x1xf32> -> vector<16x1xf32>
    %62 = arith.mulf %60, %61 : vector<16x1xf32>
    %cst_21 = arith.constant 2.000000e+00 : f32
    %63 = vector.broadcast %cst_21 : f32 to vector<16x1xf32>
    %64 = arith.subf %63, %62 : vector<16x1xf32>
    %65 = arith.mulf %61, %64 : vector<16x1xf32>
    %cst_22 = arith.constant dense<0.000000e+00> : vector<16x16xf32>
    %66 = tpu.matmul %58, %43, %cst_22 {dimension_numbers = #tpu.dot_dimension_numbers<[1], [0], [0], [1], [0, 0, 1, 1], [], []>} : vector<16x16xf32>, vector<16x16xf32>, vector<16x16xf32> -> vector<16x16xf32>
    %67 = vector.broadcast %65 : vector<16x1xf32> to vector<16x16xf32>
    %68 = arith.mulf %66, %67 : vector<16x16xf32>
    %c0_23 = arith.constant 0 : index
    %c0_24 = arith.constant 0 : index
    %69 = vector.load %arg5[%c0_23, %c0_24] : memref<1x16xf32, #tpu.memory_space<vmem>>, vector<1x16xf32>
    %70 = vector.broadcast %69 : vector<1x16xf32> to vector<16x16xf32>
    %71 = arith.addf %68, %70 : vector<16x16xf32>
    %cst_25 = arith.constant 0.000000e+00 : f32
    %72 = vector.broadcast %cst_25 : f32 to vector<16x16xf32>
    %73 = arith.cmpf ogt, %71, %72 : vector<16x16xf32>
    %cst_26 = arith.constant 0.000000e+00 : f32
    %74 = vector.broadcast %cst_26 : f32 to vector<16x16xf32>
    %75 = arith.minimumf %71, %74 : vector<16x16xf32>
    %76 = math.exp %75 : vector<16x16xf32>
    %cst_27 = arith.constant 1.000000e+00 : f32
    %77 = vector.broadcast %cst_27 : f32 to vector<16x16xf32>
    %78 = arith.subf %76, %77 : vector<16x16xf32>
    %79 = arith.select %73, %71, %78 : vector<16x16xi1>, vector<16x16xf32>
    %c0_28 = arith.constant 0 : index
    %c0_29 = arith.constant 0 : index
    %80 = vector.load %arg7[%c0_28, %c0_29] : memref<16x16xf32, #tpu.memory_space<vmem>>, vector<16x16xf32>
    %cst_30 = arith.constant dense<0.000000e+00> : vector<16x16xf32>
    %81 = tpu.matmul %79, %80, %cst_30 {dimension_numbers = #tpu.dot_dimension_numbers<[1], [0], [0], [1], [0, 0, 1, 1], [], []>} : vector<16x16xf32>, vector<16x16xf32>, vector<16x16xf32> -> vector<16x16xf32>
    %c0_31 = arith.constant 0 : index
    %c0_32 = arith.constant 0 : index
    %82 = vector.load %arg8[%c0_31, %c0_32] : memref<16x16xf32, #tpu.memory_space<vmem>>, vector<16x16xf32>
    %cst_33 = arith.constant dense<0.000000e+00> : vector<16x16xf32>
    %83 = tpu.matmul %79, %82, %cst_33 {dimension_numbers = #tpu.dot_dimension_numbers<[1], [0], [0], [1], [0, 0, 1, 1], [], []>} : vector<16x16xf32>, vector<16x16xf32>, vector<16x16xf32> -> vector<16x16xf32>
    %84 = tpu.concatenate %81, %83 in 0 : vector<16x16xf32>, vector<16x16xf32> -> vector<32x16xf32>
    %c0_34 = arith.constant 0 : index
    %c0_35 = arith.constant 0 : index
    %85 = vector.load %arg6[%c0_34, %c0_35] : memref<32x32xf32, #tpu.memory_space<vmem>>, vector<32x32xf32>
    %cst_36 = arith.constant dense<0.000000e+00> : vector<32x16xf32>
    %86 = tpu.matmul %85, %84, %cst_36 {dimension_numbers = #tpu.dot_dimension_numbers<[1], [0], [0], [1], [0, 0, 1, 1], [], []>} : vector<32x32xf32>, vector<32x16xf32>, vector<32x16xf32> -> vector<32x16xf32>
    %c0_37 = arith.constant 0 : index
    %c0_38 = arith.constant 0 : index
    %87 = vector.load %arg9[%c0_37, %c0_38] : memref<1x16xf32, #tpu.memory_space<vmem>>, vector<1x16xf32>
    %88 = vector.broadcast %87 : vector<1x16xf32> to vector<32x16xf32>
    %89 = arith.addf %86, %88 : vector<32x16xf32>
    %cst_39 = arith.constant 0.000000e+00 : f32
    %90 = vector.broadcast %cst_39 : f32 to vector<32x16xf32>
    %91 = arith.maximumf %89, %90 : vector<32x16xf32>
    %c0_40 = arith.constant 0 : index
    %c0_41 = arith.constant 0 : index
    %92 = vector.load %arg10[%c0_40, %c0_41] : memref<16x4xf32, #tpu.memory_space<vmem>>, vector<16x4xf32>
    %cst_42 = arith.constant dense<0.000000e+00> : vector<32x4xf32>
    %93 = tpu.matmul %91, %92, %cst_42 {dimension_numbers = #tpu.dot_dimension_numbers<[1], [0], [0], [1], [0, 0, 1, 1], [], []>} : vector<32x16xf32>, vector<16x4xf32>, vector<32x4xf32> -> vector<32x4xf32>
    %c0_43 = arith.constant 0 : index
    %c0_44 = arith.constant 0 : index
    %94 = vector.load %arg11[%c0_43, %c0_44] : memref<1x4xf32, #tpu.memory_space<vmem>>, vector<1x4xf32>
    %95 = vector.broadcast %94 : vector<1x4xf32> to vector<32x4xf32>
    %96 = arith.addf %93, %95 : vector<32x4xf32>
    %cst_45 = arith.constant dense<0xFF800000> : vector<32xf32>
    %97 = vector.multi_reduction <maximumf>, %96, %cst_45 [1] : vector<32x4xf32> to vector<32xf32>
    %98 = vector.shape_cast %97 : vector<32xf32> to vector<32x1xf32>
    %99 = vector.broadcast %98 : vector<32x1xf32> to vector<32x4xf32>
    %100 = arith.subf %96, %99 : vector<32x4xf32>
    %101 = math.exp %100 : vector<32x4xf32>
    %cst_46 = arith.constant dense<0.000000e+00> : vector<32xf32>
    %102 = vector.multi_reduction <add>, %101, %cst_46 [1] : vector<32x4xf32> to vector<32xf32>
    %103 = vector.shape_cast %102 : vector<32xf32> to vector<32x1xf32>
    %104 = math.log %103 : vector<32x1xf32>
    %105 = arith.addf %104, %98 : vector<32x1xf32>
    %106 = vector.broadcast %105 : vector<32x1xf32> to vector<32x4xf32>
    %107 = arith.subf %96, %106 : vector<32x4xf32>
    %c0_47 = arith.constant 0 : index
    %c0_48 = arith.constant 0 : index
    %108 = vector.load %arg12[%c0_47, %c0_48] : memref<32x4xf32, #tpu.memory_space<vmem>>, vector<32x4xf32>
    tpu.vector_store %arg12[%c0_47, %c0_48], %107 {strides = array<i32>} : memref<32x4xf32, #tpu.memory_space<vmem>>, vector<32x4xf32>,
    return
  }
}

</mosaic_0001>

<llo_original>
// kernel: gat2_forward.1
$region0: #{gat2_forward.1}
  #allocation0 [shape = 'u32[]', space=smem, size = 0x4, offset = 0x4, fixed_abs, tag = 'smem constant byte address 0x4 - core index']
  #allocation1 [shape = 'u32[72,128]{1,0:T(1,128)}', space=vmem, size = 0x9000, scoped, tag = 'internal scratch']
  %s0 = inlined_call_operand.vmem [shape: f32[16,8], index: 0, kind: input, shape index: {}]
  %s1 = inlined_call_operand.hbm [shape: f32[16,16], index: 1, kind: input, shape index: {}]
  %s2 = inlined_call_operand.hbm [shape: f32[8,18], index: 2, kind: input, shape index: {}]
  %s3 = inlined_call_operand.hbm [shape: f32[1,16], index: 3, kind: input, shape index: {}]
  %s4 = inlined_call_operand.vmem [shape: f32[16,18], index: 4, kind: input, shape index: {}]
  %s5 = inlined_call_operand.hbm [shape: f32[1,16], index: 5, kind: input, shape index: {}]
  %s6 = inlined_call_operand.vmem [shape: f32[32,32], index: 6, kind: input, shape index: {}]
  %s7 = inlined_call_operand.hbm [shape: f32[16,16], index: 7, kind: input, shape index: {}]
  %s8 = inlined_call_operand.hbm [shape: f32[16,16], index: 8, kind: input, shape index: {}]
  %s9 = inlined_call_operand.hbm [shape: f32[1,16], index: 9, kind: input, shape index: {}]
  %s10 = inlined_call_operand.vmem [shape: f32[16,4], index: 10, kind: input, shape index: {}]
  %s11 = inlined_call_operand.hbm [shape: f32[1,4], index: 11, kind: input, shape index: {}]
  %s12 = inlined_call_operand.vmem [shape: f32[32,4], index: 12, kind: output, shape index: {}]
  %s13 = sld [smem:[#allocation0]]
  $region90: #{gat2_forward.1} parent=0
    _
  %s15 = ssub.s32 1, %s13
  %s16 = scalar_select 0, %s15, %s13
  $region1: #{gat2_forward.1} parent=0
    #allocation2 [shape = 'u8[8192]{0}', space=vmem, size = 0x2000, scoped, tag = 'input window, operand 1, single buffered']
    #allocation3 [shape = 's32[1]{0}', space=sflag, size = 0x4, scoped, tag = 'scoped memory for gat2_forward.1']
    #allocation4 [shape = 'u8[4096]{0}', space=vmem, size = 0x1000, scoped, tag = 'input window, operand 2, single buffered']
    #allocation5 [shape = 's32[1]{0}', space=sflag, size = 0x4, scoped, tag = 'scoped memory for gat2_forward.1']
    #allocation6 [shape = 'u8[512]{0}', space=vmem, size = 0x400, scoped, tag = 'input window, operand 3, single buffered']
    #allocation7 [shape = 'u8[512]{0}', space=vmem, size = 0x400, scoped, tag = 'input window, operand 5, single buffered']
    #allocation8 [shape = 's32[1]{0}', space=sflag, size = 0x4, scoped, tag = 'scoped memory for gat2_forward.1']
    #allocation9 [shape = 'u8[8192]{0}', space=vmem, size = 0x2000, scoped, tag = 'input window, operand 7, single buffered']
    #allocation10 [shape = 'u8[8192]{0}', space=vmem, size = 0x2000, scoped, tag = 'input window, operand 8, single buffered']
    #allocation11 [shape = 's32[1]{0}', space=sflag, size = 0x4, scoped, tag = 'scoped memory for gat2_forward.1']
    #allocation12 [shape = 'u8[512]{0}', space=vmem, size = 0x400, scoped, tag = 'input window, operand 9, single buffered']
    #allocation13 [shape = 'u8[512]{0}', space=vmem, size = 0x400, scoped, tag = 'input window, operand 11, single buffered']
    #allocation14 [shape = 's32[1]{0}', space=sflag, size = 0x4, scoped, tag = 'scoped memory for gat2_forward.1']
    %17 = vsyncpa [#allocation3], 0
    %18 = vsyncpa [#allocation5], 0
    %19 = vsyncpa [#allocation8], 0
    %20 = vsyncpa [#allocation11], 0
    %21 = vsyncpa [#allocation14], 0
    // Predicated region
    $region2: #{gat2_forward.1} parent=1 // pred_check
      _
    $region3: #{gat2_forward.1} parent=1 // pred_check_branch
      %23 = sbr.rel (0) target = $region5
    $region4: #{gat2_forward.1} parent=1 // pred_region
      _
    $region5: #{gat2_forward.1} parent=1 // pred_fallthru
      _
    // Predicated region
    $region6: #{gat2_forward.1} parent=1 // pred_check
      _
    $region7: #{gat2_forward.1} parent=1 // pred_check_branch
      %25 = sbr.rel (0) target = $region9
    $region8: #{gat2_forward.1} parent=1 // pred_region
      %27 = vsyncadd [#allocation3], 0
      %s28 = sshll.u32 %s1, 4
      %s29 = int_to_ptr.hbm [resolvable:$true] %s28
      %s30 = sshll.u32 [#allocation2], 4
      %s31 = int_to_ptr.vmem [resolvable:$true] %s30
      %36 = dma.hbm_to_vmem [thread:$0]  %s29, 256, %s31, [#allocation3], 128, 128, 8
    $region9: #{gat2_forward.1} parent=1 // pred_fallthru
      _
    // Predicated region
    $region10: #{gat2_forward.1} parent=1 // pred_check
      _
    $region11: #{gat2_forward.1} parent=1 // pred_check_branch
      %38 = sbr.rel (0) target = $region13
    $region12: #{gat2_forward.1} parent=1 // pred_region
      %40 = vsyncadd [#allocation5], 0
      %s42 = sshll.u32 %s2, 4
      %s43 = int_to_ptr.hbm [resolvable:$true] %s42
      %s44 = sshll.u32 [#allocation4], 4
      %s45 = int_to_ptr.vmem [resolvable:$true] %s44
      %47 = dma.hbm_to_vmem [thread:$0]  %s43, 128, %s45, [#allocation5]
    $region13: #{gat2_forward.1} parent=1 // pred_fallthru
      _
    // Predicated region
    $region14: #{gat2_forward.1} parent=1 // pred_check
      _
    $region15: #{gat2_forward.1} parent=1 // pred_check_branch
      %49 = sbr.rel (0) target = $region17
    $region16: #{gat2_forward.1} parent=1 // pred_region
      %51 = vsyncadd [#allocation5], 0
      %s53 = sshll.u32 %s3, 4
      %s54 = int_to_ptr.hbm [resolvable:$true] %s53
      %s55 = sshll.u32 [#allocation6], 4
      %s56 = int_to_ptr.vmem [resolvable:$true] %s55
      %58 = dma.hbm_to_vmem [thread:$0]  %s54, 16, %s56, [#allocation5]
    $region17: #{gat2_forward.1} parent=1 // pred_fallthru
      _
    // Predicated region
    $region18: #{gat2_forward.1} parent=1 // pred_check
      _
    $region19: #{gat2_forward.1} parent=1 // pred_check_branch
      %60 = sbr.rel (0) target = $region21
    $region20: #{gat2_forward.1} parent=1 // pred_region
      _
    $region21: #{gat2_forward.1} parent=1 // pred_fallthru
      _
    // Predicated region
    $region22: #{gat2_forward.1} parent=1 // pred_check
      _
    $region23: #{gat2_forward.1} parent=1 // pred_check_branch
      %62 = sbr.rel (0) target = $region25
    $region24: #{gat2_forward.1} parent=1 // pred_region
      %64 = vsyncadd [#allocation8], 0
      %s66 = sshll.u32 %s5, 4
      %s67 = int_to_ptr.hbm [resolvable:$true] %s66
      %s68 = sshll.u32 [#allocation7], 4
      %s69 = int_to_ptr.vmem [resolvable:$true] %s68
      %71 = dma.hbm_to_vmem [thread:$0]  %s67, 16, %s69, [#allocation8]
    $region25: #{gat2_forward.1} parent=1 // pred_fallthru
      _
    // Predicated region
    $region26: #{gat2_forward.1} parent=1 // pred_check
      _
    $region27: #{gat2_forward.1} parent=1 // pred_check_branch
      %73 = sbr.rel (0) target = $region29
    $region28: #{gat2_forward.1} parent=1 // pred_region
      _
    $region29: #{gat2_forward.1} parent=1 // pred_fallthru
      _
    // Predicated region
    $region30: #{gat2_forward.1} parent=1 // pred_check
      _
    $region31: #{gat2_forward.1} parent=1 // pred_check_branch
      %75 = sbr.rel (0) target = $region33
    $region32: #{gat2_forward.1} parent=1 // pred_region
      %77 = vsyncadd [#allocation8], 0
      %s78 = sshll.u32 %s7, 4
      %s79 = int_to_ptr.hbm [resolvable:$true] %s78
      %s80 = sshll.u32 [#allocation9], 4
      %s81 = int_to_ptr.vmem [resolvable:$true] %s80
      %86 = dma.hbm_to_vmem [thread:$0]  %s79, 256, %s81, [#allocation8], 128, 128, 8
    $region33: #{gat2_forward.1} parent=1 // pred_fallthru
      _
    // Predicated region
    $region34: #{gat2_forward.1} parent=1 // pred_check
      _
    $region35: #{gat2_forward.1} parent=1 // pred_check_branch
      %88 = sbr.rel (0) target = $region37
    $region36: #{gat2_forward.1} parent=1 // pred_region
      %90 = vsyncadd [#allocation11], 0
      %s91 = sshll.u32 %s8, 4
      %s92 = int_to_ptr.hbm [resolvable:$true] %s91
      %s93 = sshll.u32 [#allocation10], 4
      %s94 = int_to_ptr.vmem [resolvable:$true] %s93
      %99 = dma.hbm_to_vmem [thread:$0]  %s92, 256, %s94, [#allocation11], 128, 128, 8
    $region37: #{gat2_forward.1} parent=1 // pred_fallthru
      _
    // Predicated region
    $region38: #{gat2_forward.1} parent=1 // pred_check
      _
    $region39: #{gat2_forward.1} parent=1 // pred_check_branch
      %101 = sbr.rel (0) target = $region41
    $region40: #{gat2_forward.1} parent=1 // pred_region
      %103 = vsyncadd [#allocation11], 0
      %s105 = sshll.u32 %s9, 4
      %s106 = int_to_ptr.hbm [resolvable:$true] %s105
      %s107 = sshll.u32 [#allocation12], 4
      %s108 = int_to_ptr.vmem [resolvable:$true] %s107
      %110 = dma.hbm_to_vmem [thread:$0]  %s106, 16, %s108, [#allocation11]
    $region41: #{gat2_forward.1} parent=1 // pred_fallthru
      _
    // Predicated region
    $region42: #{gat2_forward.1} parent=1 // pred_check
      _
    $region43: #{gat2_forward.1} parent=1 // pred_check_branch
      %112 = sbr.rel (0) target = $region45
    $region44: #{gat2_forward.1} parent=1 // pred_region
      _
    $region45: #{gat2_forward.1} parent=1 // pred_fallthru
      _
    // Predicated region
    $region46: #{gat2_forward.1} parent=1 // pred_check
      _
    $region47: #{gat2_forward.1} parent=1 // pred_check_branch
      %114 = sbr.rel (0) target = $region49
    $region48: #{gat2_forward.1} parent=1 // pred_region
      %116 = vsyncadd [#allocation14], 0
      %s118 = sshll.u32 %s11, 4
      %s119 = int_to_ptr.hbm [resolvable:$true] %s118
      %s120 = sshll.u32 [#allocation13], 4
      %s121 = int_to_ptr.vmem [resolvable:$true] %s120
      %123 = dma.hbm_to_vmem [thread:$0]  %s119, 16, %s121, [#allocation14]
    $region49: #{gat2_forward.1} parent=1 // pred_fallthru
      _
    // Predicated region
    $region50: #{gat2_forward.1} parent=1 // pred_check
      _
    $region51: #{gat2_forward.1} parent=1 // pred_check_branch
      %125 = sbr.rel (0) target = $region53
    $region52: #{gat2_forward.1} parent=1 // pred_region
      %127 = dma.done [#allocation3], 256
    $region53: #{gat2_forward.1} parent=1 // pred_fallthru
      _
    // Predicated region
    $region54: #{gat2_forward.1} parent=1 // pred_check
      _
    $region55: #{gat2_forward.1} parent=1 // pred_check_branch
      %129 = sbr.rel (0) target = $region57
    $region56: #{gat2_forward.1} parent=1 // pred_region
      %131 = dma.done [#allocation5], 128
    $region57: #{gat2_forward.1} parent=1 // pred_fallthru
      _
    // Predicated region
    $region58: #{gat2_forward.1} parent=1 // pred_check
      _
    $region59: #{gat2_forward.1} parent=1 // pred_check_branch
      %133 = sbr.rel (0) target = $region61
    $region60: #{gat2_forward.1} parent=1 // pred_region
      %135 = dma.done [#allocation5], 16
    $region61: #{gat2_forward.1} parent=1 // pred_fallthru
      _
    // Predicated region
    $region62: #{gat2_forward.1} parent=1 // pred_check
      _
    $region63: #{gat2_forward.1} parent=1 // pred_check_branch
      %137 = sbr.rel (0) target = $region65
    $region64: #{gat2_forward.1} parent=1 // pred_region
      %139 = dma.done [#allocation8], 16
    $region65: #{gat2_forward.1} parent=1 // pred_fallthru
      _
    // Predicated region
    $region66: #{gat2_forward.1} parent=1 // pred_check
      _
    $region67: #{gat2_forward.1} parent=1 // pred_check_branch
      %141 = sbr.rel (0) target = $region69
    $region68: #{gat2_forward.1} parent=1 // pred_region
      %143 = dma.done [#allocation8], 256
    $region69: #{gat2_forward.1} parent=1 // pred_fallthru
      _
    // Predicated region
    $region70: #{gat2_forward.1} parent=1 // pred_check
      _
    $region71: #{gat2_forward.1} parent=1 // pred_check_branch
      %145 = sbr.rel (0) target = $region73
    $region72: #{gat2_forward.1} parent=1 // pred_region
      %147 = dma.done [#allocation11], 256
    $region73: #{gat2_forward.1} parent=1 // pred_fallthru
      _
    // Predicated region
    $region74: #{gat2_forward.1} parent=1 // pred_check
      _
    $region75: #{gat2_forward.1} parent=1 // pred_check_branch
      %149 = sbr.rel (0) target = $region77
    $region76: #{gat2_forward.1} parent=1 // pred_region
      %151 = dma.done [#allocation11], 16
    $region77: #{gat2_forward.1} parent=1 // pred_fallthru
      _
    // Predicated region
    $region78: #{gat2_forward.1} parent=1 // pred_check
      _
    $region79: #{gat2_forward.1} parent=1 // pred_check_branch
      %153 = sbr.rel (0) target = $region81
    $region80: #{gat2_forward.1} parent=1 // pred_region
      %155 = dma.done [#allocation14], 16
    $region81: #{gat2_forward.1} parent=1 // pred_fallthru
      _
    %v156 = vld [vmem:[#allocation2] sm:$0xff]
    %v157 = vld [vmem:[#allocation2 + $0x8] sm:$0xff]
    %v158 = vld [vmem:[%s0] sm:$0xff]
    %v159 = vld [vmem:[%s0 + $0x8] sm:$0xff]
    %v160 = vld [vmem:[#allocation4] sm:$0xff]
    %vm161 = vcmask 64512
    %v163 = vsel %vm161, %v158, 0
    %v166 = vsel %vm161, %v159, 0
    %168 = vmatpush.msra.mxu0 0.0
    %169 = vmatpush.msra.mxu0 0.0
    %170 = vmatpush.msra.mxu0 0.0
    %171 = vmatpush.msra.mxu0 0.0
    %172 = vmatpush.msra.mxu0 0.0
    %173 = vmatpush.msra.mxu0 0.0
    %174 = vmatpush.msra.mxu0 0.0
    %175 = vmatpush.msra.mxu0 0.0
    %176 = vmatpush.msra.mxu0 0.0
    %177 = vmatpush.msra.mxu0 0.0
    %178 = vmatpush.msra.mxu0 0.0
    %179 = vmatpush.msra.mxu0 0.0
    %180 = vmatpush.msra.mxu0 0.0
    %181 = vmatpush.msra.mxu0 0.0
    %182 = vmatpush.msra.mxu0 0.0
    %183 = vmatpush.msra.mxu0 %v160
    %184 = vmatmul.f32.gmra.mxu0 %v163
    %v185 = vpop.f32.mrf.mxu0
    %v186 = vadd.f32 0.0, %v185
    %187 = vmatmul.f32.gmra.mxu0 %v166
    %v188 = vpop.f32.mrf.mxu0
    %v189 = vadd.f32 0.0, %v188
    %190 = vdwg.mxu0
    %193 = vrot.lane.b32.xlu0 %v186, 112
    %v194 = vpop.permute.xlu0 %193
    %195 = vrot.lane.b32.xlu0 %v189, 112
    %v196 = vpop.permute.xlu0 %195
    %199 = vxpose.xlu0.b32.start [1/16] %v194, 128
    %200 = vxpose.xlu0.b32.cont [2/16] %v196, 128
    %201 = vxpose.xlu0.b32.cont [3/16] 0.0, 128
    %202 = vxpose.xlu0.b32.cont [4/16] 0.0, 128
    %203 = vxpose.xlu0.b32.cont [5/16] 0.0, 128
    %204 = vxpose.xlu0.b32.cont [6/16] 0.0, 128
    %205 = vxpose.xlu0.b32.cont [7/16] 0.0, 128
    %206 = vxpose.xlu0.b32.cont [8/16] 0.0, 128
    %207 = vxpose.xlu0.b32.cont [9/16] 0.0, 128
    %208 = vxpose.xlu0.b32.cont [10/16] 0.0, 128
    %209 = vxpose.xlu0.b32.cont [11/16] 0.0, 128
    %210 = vxpose.xlu0.b32.cont [12/16] 0.0, 128
    %211 = vxpose.xlu0.b32.cont [13/16] 0.0, 128
    %212 = vxpose.xlu0.b32.cont [14/16] 0.0, 128
    %213 = vxpose.xlu0.b32.cont [15/16] 0.0, 128
    %214 = vxpose.xlu0.b32.end [16/16] 0.0, 128
    %v215 = vpop.trf.xlu0
    %v216 = vpop.trf.xlu0
    %v217 = vpop.trf.xlu0
    %v218 = vpop.trf.xlu0
    %v219 = vpop.trf.xlu0
    %v220 = vpop.trf.xlu0
    %v221 = vpop.trf.xlu0
    %v222 = vpop.trf.xlu0
    %v223 = vpop.trf.xlu0
    %v224 = vpop.trf.xlu0
    %v225 = vpop.trf.xlu0
    %v226 = vpop.trf.xlu0
    %v227 = vpop.trf.xlu0
    %v228 = vpop.trf.xlu0
    %v229 = vpop.trf.xlu0
    %v230 = vpop.trf.xlu0
    %231 = vset.pattern.permute.xlu0 17
    %232 = vperm.xlu0 %231, %v186
    %v233 = vpop.permute.xlu0 %232
    %235 = vset.pattern.permute.xlu0 17
    %236 = vperm.xlu0 %235, %v189
    %v237 = vpop.permute.xlu0 %236
    %v239 = vperm.slane %v215, 0
    %v240 = vadd.f32 %v233, %v239
    %v241 = vadd.f32 %v237, %v239
    %v242 = vmul.f32 %v240, 0.2
    %v243 = vmul.f32 %v241, 0.2
    %v244 = vmax.f32 %v240, %v242
    %v245 = vmax.f32 %v241, %v243
    %v246 = vadd.f32 %v244, %v156
    %v247 = vadd.f32 %v245, %v157
    %vm248 = vcmask 130048
    %v249 = vsel %vm248, %v246, -inf
    %250 = vmax.xlane.f32.xlu0 %v249
    %v251 = vpop.xlane.xlu0 %250
    %v252 = vsel %vm248, %v247, -inf
    %253 = vmax.xlane.f32.xlu0 %v252
    %v254 = vpop.xlane.xlu0 %253
    %v255 = vsub.f32 %v246, %v251
    %v256 = vsub.f32 %v247, %v254
    %v257 = vmul.f32 %v255, 1.442695
    %v258 = vpow.pop %v257
    %v259 = vmul.f32 %v256, 1.442695
    %v260 = vpow.pop %v259
    %v261 = vsel %vm248, %v258, 0.0
    %262 = vadd.xlane.f32.xlu0 %v261
    %v263 = vpop.xlane.xlu0 %262
    %v264 = vsel %vm248, %v260, 0.0
    %265 = vadd.xlane.f32.xlu0 %v264
    %v266 = vpop.xlane.xlu0 %265
    %v267 = vrcp.pop %v263
    %v268 = vrcp.pop %v266
    %v269 = vmul.f32 %v263, %v267
    %v270 = vmul.f32 %v266, %v268
    %v271 = vsub.f32 2.0, %v269
    %v272 = vsub.f32 2.0, %v270
    %v273 = vmul.f32 %v267, %v271
    %v274 = vmul.f32 %v268, %v272
    %v276 = vsel %vm248, %v258, 0
    %v279 = vsel %vm248, %v260, 0
    %281 = vmatpush.msra.mxu0 0.0
    %282 = vmatpush.msra.mxu0 0.0
    %283 = vmatpush.msra.mxu0 0.0
    %284 = vmatpush.msra.mxu0 0.0
    %285 = vmatpush.msra.mxu0 0.0
    %286 = vmatpush.msra.mxu0 0.0
    %287 = vmatpush.msra.mxu0 0.0
    %288 = vmatpush.msra.mxu0 0.0
    %289 = vmatpush.msra.mxu0 0.0
    %290 = vmatpush.msra.mxu0 0.0
    %291 = vmatpush.msra.mxu0 0.0
    %292 = vmatpush.msra.mxu0 0.0
    %293 = vmatpush.msra.mxu0 0.0
    %294 = vmatpush.msra.mxu0 0.0
    %295 = vmatpush.msra.mxu0 %v189
    %296 = vmatpush.msra.mxu0 %v186
    %297 = vmatmul.f32.gmra.mxu0 %v276
    %v298 = vpop.f32.mrf.mxu0
    %v299 = vadd.f32 0.0, %v298
    %300 = vmatmul.f32.gmra.mxu0 %v279
    %v301 = vpop.f32.mrf.mxu0
    %v302 = vadd.f32 0.0, %v301
    %303 = vdwg.mxu0
    %v304 = vmul.f32 %v299, %v273
    %v305 = vmul.f32 %v302, %v274
    %v306 = vld [vmem:[#allocation6] sm:$0x1]
    %v308 = vperm.slane %v306, 0
    %v310 = vadd.f32 %v304, %v308
    %v311 = vadd.f32 %v305, %v308
    %vm312 = vcmp.gt.f32.partialorder %v310, 0.0
    %vm313 = vcmp.gt.f32.partialorder %v311, 0.0
    %v314 = vmin.f32 %v310, 0.0
    %v315 = vmin.f32 %v311, 0.0
    %v316 = vmul.f32 %v314, 1.442695
    %v317 = vpow.pop %v316
    %v318 = vmul.f32 %v315, 1.442695
    %v319 = vpow.pop %v318
    %v320 = vsub.f32 %v317, 1.0
    %v321 = vsub.f32 %v319, 1.0
    %v322 = vsel %vm312, %v310, %v320
    %v323 = vsel %vm313, %v311, %v321
    %v324 = vld [vmem:[%s4] sm:$0xff]
    %v325 = vld [vmem:[%s4 + $0x8] sm:$0xff]
    %v327 = vsel %vm248, %v322, 0
    %v330 = vsel %vm248, %v323, 0
    %332 = vmatpush.msra.mxu0 0.0
    %333 = vmatpush.msra.mxu0 0.0
    %334 = vmatpush.msra.mxu0 0.0
    %335 = vmatpush.msra.mxu0 0.0
    %336 = vmatpush.msra.mxu0 0.0
    %337 = vmatpush.msra.mxu0 0.0
    %338 = vmatpush.msra.mxu0 0.0
    %339 = vmatpush.msra.mxu0 0.0
    %340 = vmatpush.msra.mxu0 0.0
    %341 = vmatpush.msra.mxu0 0.0
    %342 = vmatpush.msra.mxu0 0.0
    %343 = vmatpush.msra.mxu0 0.0
    %344 = vmatpush.msra.mxu0 0.0
    %345 = vmatpush.msra.mxu0 0.0
    %346 = vmatpush.msra.mxu0 %v325
    %347 = vmatpush.msra.mxu0 %v324
    %348 = vmatmul.f32.gmra.mxu0 %v327
    %v349 = vpop.f32.mrf.mxu0
    %v350 = vadd.f32 0.0, %v349
    %351 = vmatmul.f32.gmra.mxu0 %v330
    %v352 = vpop.f32.mrf.mxu0
    %v353 = vadd.f32 0.0, %v352
    %354 = vdwg.mxu0
    %357 = vrot.lane.b32.xlu0 %v350, 112
    %v358 = vpop.permute.xlu0 %357
    %359 = vrot.lane.b32.xlu0 %v353, 112
    %v360 = vpop.permute.xlu0 %359
    %363 = vxpose.xlu0.b32.start [1/16] %v358, 128
    %364 = vxpose.xlu0.b32.cont [2/16] %v360, 128
    %365 = vxpose.xlu0.b32.cont [3/16] 0.0, 128
    %366 = vxpose.xlu0.b32.cont [4/16] 0.0, 128
    %367 = vxpose.xlu0.b32.cont [5/16] 0.0, 128
    %368 = vxpose.xlu0.b32.cont [6/16] 0.0, 128
    %369 = vxpose.xlu0.b32.cont [7/16] 0.0, 128
    %370 = vxpose.xlu0.b32.cont [8/16] 0.0, 128
    %371 = vxpose.xlu0.b32.cont [9/16] 0.0, 128
    %372 = vxpose.xlu0.b32.cont [10/16] 0.0, 128
    %373 = vxpose.xlu0.b32.cont [11/16] 0.0, 128
    %374 = vxpose.xlu0.b32.cont [12/16] 0.0, 128
    %375 = vxpose.xlu0.b32.cont [13/16] 0.0, 128
    %376 = vxpose.xlu0.b32.cont [14/16] 0.0, 128
    %377 = vxpose.xlu0.b32.cont [15/16] 0.0, 128
    %378 = vxpose.xlu0.b32.end [16/16] 0.0, 128
    %v379 = vpop.trf.xlu0
    %v380 = vpop.trf.xlu0
    %v381 = vpop.trf.xlu0
    %v382 = vpop.trf.xlu0
    %v383 = vpop.trf.xlu0
    %v384 = vpop.trf.xlu0
    %v385 = vpop.trf.xlu0
    %v386 = vpop.trf.xlu0
    %v387 = vpop.trf.xlu0
    %v388 = vpop.trf.xlu0
    %v389 = vpop.trf.xlu0
    %v390 = vpop.trf.xlu0
    %v391 = vpop.trf.xlu0
    %v392 = vpop.trf.xlu0
    %v393 = vpop.trf.xlu0
    %v394 = vpop.trf.xlu0
    %395 = vset.pattern.permute.xlu0 17
    %396 = vperm.xlu0 %395, %v350
    %v397 = vpop.permute.xlu0 %396
    %399 = vset.pattern.permute.xlu0 17
    %400 = vperm.xlu0 %399, %v353
    %v401 = vpop.permute.xlu0 %400
    %v403 = vperm.slane %v379, 0
    %v404 = vadd.f32 %v397, %v403
    %v405 = vadd.f32 %v401, %v403
    %v406 = vmul.f32 %v404, 0.2
    %v407 = vmul.f32 %v405, 0.2
    %v408 = vmax.f32 %v404, %v406
    %v409 = vmax.f32 %v405, %v407
    %v410 = vadd.f32 %v408, %v156
    %v411 = vadd.f32 %v409, %v157
    %v412 = vsel %vm248, %v410, -inf
    %413 = vmax.xlane.f32.xlu0 %v412
    %v414 = vpop.xlane.xlu0 %413
    %v415 = vsel %vm248, %v411, -inf
    %416 = vmax.xlane.f32.xlu0 %v415
    %v417 = vpop.xlane.xlu0 %416
    %v418 = vsub.f32 %v410, %v414
    %v419 = vsub.f32 %v411, %v417
    %v420 = vmul.f32 %v418, 1.442695
    %v421 = vpow.pop %v420
    %v422 = vmul.f32 %v419, 1.442695
    %v423 = vpow.pop %v422
    %v424 = vsel %vm248, %v421, 0.0
    %425 = vadd.xlane.f32.xlu0 %v424
    %v426 = vpop.xlane.xlu0 %425
    %v427 = vsel %vm248, %v423, 0.0
    %428 = vadd.xlane.f32.xlu0 %v427
    %v429 = vpop.xlane.xlu0 %428
    %v430 = vrcp.pop %v426
    %v431 = vrcp.pop %v429
    %v432 = vmul.f32 %v426, %v430
    %v433 = vmul.f32 %v429, %v431
    %v434 = vsub.f32 2.0, %v432
    %v435 = vsub.f32 2.0, %v433
    %v436 = vmul.f32 %v430, %v434
    %v437 = vmul.f32 %v431, %v435
    %v439 = vsel %vm248, %v421, 0
    %v442 = vsel %vm248, %v423, 0
    %444 = vmatpush.msra.mxu0 0.0
    %445 = vmatpush.msra.mxu0 0.0
    %446 = vmatpush.msra.mxu0 0.0
    %447 = vmatpush.msra.mxu0 0.0
    %448 = vmatpush.msra.mxu0 0.0
    %449 = vmatpush.msra.mxu0 0.0
    %450 = vmatpush.msra.mxu0 0.0
    %451 = vmatpush.msra.mxu0 0.0
    %452 = vmatpush.msra.mxu0 0.0
    %453 = vmatpush.msra.mxu0 0.0
    %454 = vmatpush.msra.mxu0 0.0
    %455 = vmatpush.msra.mxu0 0.0
    %456 = vmatpush.msra.mxu0 0.0
    %457 = vmatpush.msra.mxu0 0.0
    %458 = vmatpush.msra.mxu0 %v353
    %459 = vmatpush.msra.mxu0 %v350
    %460 = vmatmul.f32.gmra.mxu0 %v439
    %v461 = vpop.f32.mrf.mxu0
    %v462 = vadd.f32 0.0, %v461
    %463 = vmatmul.f32.gmra.mxu0 %v442
    %v464 = vpop.f32.mrf.mxu0
    %v465 = vadd.f32 0.0, %v464
    %466 = vdwg.mxu0
    %v467 = vmul.f32 %v462, %v436
    %v468 = vmul.f32 %v465, %v437
    %v469 = vld [vmem:[#allocation7] sm:$0x1]
    %v471 = vperm.slane %v469, 0
    %v473 = vadd.f32 %v467, %v471
    %v474 = vadd.f32 %v468, %v471
    %vm475 = vcmp.gt.f32.partialorder %v473, 0.0
    %vm476 = vcmp.gt.f32.partialorder %v474, 0.0
    %v477 = vmin.f32 %v473, 0.0
    %v478 = vmin.f32 %v474, 0.0
    %v479 = vmul.f32 %v477, 1.442695
    %v480 = vpow.pop %v479
    %v481 = vmul.f32 %v478, 1.442695
    %v482 = vpow.pop %v481
    %v483 = vsub.f32 %v480, 1.0
    %v484 = vsub.f32 %v482, 1.0
    %v485 = vsel %vm475, %v473, %v483
    %v486 = vsel %vm476, %v474, %v484
    %v487 = vld [vmem:[#allocation9] sm:$0xff]
    %v488 = vld [vmem:[#allocation9 + $0x8] sm:$0xff]
    %v490 = vsel %vm248, %v485, 0
    %v493 = vsel %vm248, %v486, 0
    %495 = vmatpush.msra.mxu0 0.0
    %496 = vmatpush.msra.mxu0 0.0
    %497 = vmatpush.msra.mxu0 0.0
    %498 = vmatpush.msra.mxu0 0.0
    %499 = vmatpush.msra.mxu0 0.0
    %500 = vmatpush.msra.mxu0 0.0
    %501 = vmatpush.msra.mxu0 0.0
    %502 = vmatpush.msra.mxu0 0.0
    %503 = vmatpush.msra.mxu0 0.0
    %504 = vmatpush.msra.mxu0 0.0
    %505 = vmatpush.msra.mxu0 0.0
    %506 = vmatpush.msra.mxu0 0.0
    %507 = vmatpush.msra.mxu0 0.0
    %508 = vmatpush.msra.mxu0 0.0
    %509 = vmatpush.msra.mxu0 %v488
    %510 = vmatpush.msra.mxu0 %v487
    %511 = vmatmul.f32.gmra.mxu0 %v490
    %v512 = vpop.f32.mrf.mxu0
    %v513 = vadd.f32 0.0, %v512
    %514 = vmatmul.f32.gmra.mxu0 %v493
    %v515 = vpop.f32.mrf.mxu0
    %v516 = vadd.f32 0.0, %v515
    %517 = vdwg.mxu0
    %v518 = vld [vmem:[#allocation10] sm:$0xff]
    %v519 = vld [vmem:[#allocation10 + $0x8] sm:$0xff]
    %520 = vmatpush.msra.mxu0 0.0
    %521 = vmatpush.msra.mxu0 0.0
    %522 = vmatpush.msra.mxu0 0.0
    %523 = vmatpush.msra.mxu0 0.0
    %524 = vmatpush.msra.mxu0 0.0
    %525 = vmatpush.msra.mxu0 0.0
    %526 = vmatpush.msra.mxu0 0.0
    %527 = vmatpush.msra.mxu0 0.0
    %528 = vmatpush.msra.mxu0 0.0
    %529 = vmatpush.msra.mxu0 0.0
    %530 = vmatpush.msra.mxu0 0.0
    %531 = vmatpush.msra.mxu0 0.0
    %532 = vmatpush.msra.mxu0 0.0
    %533 = vmatpush.msra.mxu0 0.0
    %534 = vmatpush.msra.mxu0 %v519
    %535 = vmatpush.msra.mxu0 %v518
    %536 = vmatmul.f32.gmra.mxu0 %v490
    %v537 = vpop.f32.mrf.mxu0
    %v538 = vadd.f32 0.0, %v537
    %539 = vmatmul.f32.gmra.mxu0 %v493
    %v540 = vpop.f32.mrf.mxu0
    %v541 = vadd.f32 0.0, %v540
    %542 = vdwg.mxu0
    %v543 = vld [vmem:[%s6] sm:$0xff]
    %v544 = vld [vmem:[%s6 + $0x8] sm:$0xff]
    %v545 = vld [vmem:[%s6 + $0x10] sm:$0xff]
    %v546 = vld [vmem:[%s6 + $0x18] sm:$0xff]
    %v547 = vld [vmem:[#allocation12] sm:$0x1]
    %v549 = vperm.slane %v547, 0
    %vm551 = vcmask 261120
    %v553 = vsel %vm551, %v543, 0
    %v556 = vsel %vm551, %v544, 0
    %v559 = vsel %vm551, %v545, 0
    %v562 = vsel %vm551, %v546, 0
    %564 = vmatpush.msra.mxu0 0.0
    %565 = vmatpush.msra.mxu0 0.0
    %566 = vmatpush.msra.mxu0 0.0
    %567 = vmatpush.msra.mxu0 0.0
    %568 = vmatpush.msra.mxu0 0.0
    %569 = vmatpush.msra.mxu0 0.0
    %570 = vmatpush.msra.mxu0 0.0
    %571 = vmatpush.msra.mxu0 0.0
    %572 = vmatpush.msra.mxu0 0.0
    %573 = vmatpush.msra.mxu0 0.0
    %574 = vmatpush.msra.mxu0 0.0
    %575 = vmatpush.msra.mxu0 0.0
    %576 = vmatpush.msra.mxu0 %v541
    %577 = vmatpush.msra.mxu0 %v538
    %578 = vmatpush.msra.mxu0 %v516
    %579 = vmatpush.msra.mxu0 %v513
    %580 = vmatmul.f32.gmra.mxu0 %v553
    %v581 = vpop.f32.mrf.mxu0
    %v582 = vadd.f32 %v549, %v581
    %583 = vmatmul.f32.gmra.mxu0 %v556
    %v584 = vpop.f32.mrf.mxu0
    %v585 = vadd.f32 %v549, %v584
    %586 = vmatmul.f32.gmra.mxu0 %v559
    %v587 = vpop.f32.mrf.mxu0
    %v588 = vadd.f32 %v549, %v587
    %589 = vmatmul.f32.gmra.mxu0 %v562
    %v590 = vpop.f32.mrf.mxu0
    %v591 = vadd.f32 %v549, %v590
    %592 = vdwg.mxu0
    %v593 = vmax.f32 %v582, 0.0
    %v594 = vmax.f32 %v585, 0.0
    %v595 = vmax.f32 %v588, 0.0
    %v596 = vmax.f32 %v591, 0.0
    %v597 = vld [vmem:[%s10] sm:$0xff]
    %v598 = vld [vmem:[%s10 + $0x8] sm:$0xff]
    %v599 = vld [vmem:[#allocation13] sm:$0x1]
    %v601 = vperm.slane %v599, 0
    %v604 = vsel %vm248, %v593, 0
    %v607 = vsel %vm248, %v594, 0
    %v610 = vsel %vm248, %v595, 0
    %v613 = vsel %vm248, %v596, 0
    %615 = vmatpush.msra.mxu0 0.0
    %616 = vmatpush.msra.mxu0 0.0
    %617 = vmatpush.msra.mxu0 0.0
    %618 = vmatpush.msra.mxu0 0.0
    %619 = vmatpush.msra.mxu0 0.0
    %620 = vmatpush.msra.mxu0 0.0
    %621 = vmatpush.msra.mxu0 0.0
    %622 = vmatpush.msra.mxu0 0.0
    %623 = vmatpush.msra.mxu0 0.0
    %624 = vmatpush.msra.mxu0 0.0
    %625 = vmatpush.msra.mxu0 0.0
    %626 = vmatpush.msra.mxu0 0.0
    %627 = vmatpush.msra.mxu0 0.0
    %628 = vmatpush.msra.mxu0 0.0
    %629 = vmatpush.msra.mxu0 %v598
    %630 = vmatpush.msra.mxu0 %v597
    %631 = vmatmul.f32.gmra.mxu0 %v604
    %v632 = vpop.f32.mrf.mxu0
    %v633 = vadd.f32 %v601, %v632
    %634 = vmatmul.f32.gmra.mxu0 %v607
    %v635 = vpop.f32.mrf.mxu0
    %v636 = vadd.f32 %v601, %v635
    %637 = vmatmul.f32.gmra.mxu0 %v610
    %v638 = vpop.f32.mrf.mxu0
    %v639 = vadd.f32 %v601, %v638
    %640 = vmatmul.f32.gmra.mxu0 %v613
    %v641 = vpop.f32.mrf.mxu0
    %v642 = vadd.f32 %v601, %v641
    %643 = vdwg.mxu0
    %vm644 = vcmask 31744
    %v645 = vsel %vm644, %v633, -inf
    %646 = vmax.xlane.f32.xlu0 %v645
    %v647 = vpop.xlane.xlu0 %646
    %v648 = vsel %vm644, %v636, -inf
    %649 = vmax.xlane.f32.xlu0 %v648
    %v650 = vpop.xlane.xlu0 %649
    %v651 = vsel %vm644, %v639, -inf
    %652 = vmax.xlane.f32.xlu0 %v651
    %v653 = vpop.xlane.xlu0 %652
    %v654 = vsel %vm644, %v642, -inf
    %655 = vmax.xlane.f32.xlu0 %v654
    %v656 = vpop.xlane.xlu0 %655
    %v657 = vsub.f32 %v633, %v647
    %v658 = vsub.f32 %v636, %v650
    %v659 = vsub.f32 %v639, %v653
    %v660 = vsub.f32 %v642, %v656
    %v661 = vmul.f32 %v657, 1.442695
    %v662 = vpow.pop %v661
    %v663 = vmul.f32 %v658, 1.442695
    %v664 = vpow.pop %v663
    %v665 = vmul.f32 %v659, 1.442695
    %v666 = vpow.pop %v665
    %v667 = vmul.f32 %v660, 1.442695
    %v668 = vpow.pop %v667
    %v669 = vsel %vm644, %v662, 0.0
    %670 = vadd.xlane.f32.xlu0 %v669
    %v671 = vpop.xlane.xlu0 %670
    %v672 = vsel %vm644, %v664, 0.0
    %673 = vadd.xlane.f32.xlu0 %v672
    %v674 = vpop.xlane.xlu0 %673
    %v675 = vsel %vm644, %v666, 0.0
    %676 = vadd.xlane.f32.xlu0 %v675
    %v677 = vpop.xlane.xlu0 %676
    %v678 = vsel %vm644, %v668, 0.0
    %679 = vadd.xlane.f32.xlu0 %v678
    %v680 = vpop.xlane.xlu0 %679
    %v681 = vlog2.pop %v671
    %v682 = vmul.f32 %v681, 0.6931472
    %v683 = vlog2.pop %v674
    %v684 = vmul.f32 %v683, 0.6931472
    %v685 = vlog2.pop %v677
    %v686 = vmul.f32 %v685, 0.6931472
    %v687 = vlog2.pop %v680
    %v688 = vmul.f32 %v687, 0.6931472
    %v689 = vadd.f32 %v682, %v647
    %v690 = vadd.f32 %v684, %v650
    %v691 = vadd.f32 %v686, %v653
    %v692 = vadd.f32 %v688, %v656
    %v693 = vsub.f32 %v633, %v689
    %v694 = vsub.f32 %v636, %v690
    %v695 = vsub.f32 %v639, %v691
    %v696 = vsub.f32 %v642, %v692
    %697 = vst.msk [vmem:[%s12] sm:$0xff] %vm644, %v693
    %698 = vst.msk [vmem:[%s12 + $0x8] sm:$0xff] %vm644, %v694
    %699 = vst.msk [vmem:[%s12 + $0x10] sm:$0xff] %vm644, %v695
    %700 = vst.msk [vmem:[%s12 + $0x18] sm:$0xff] %vm644, %v696
    // Predicated region
    $region82: #{gat2_forward.1} parent=1 // pred_check
      _
    $region83: #{gat2_forward.1} parent=1 // pred_check_branch
      %702 = sbr.rel (0) target = $region85
    $region84: #{gat2_forward.1} parent=1 // pred_region
      _
    $region85: #{gat2_forward.1} parent=1 // pred_fallthru
      _
    // Predicated region
    $region86: #{gat2_forward.1} parent=1 // pred_check
      _
    $region87: #{gat2_forward.1} parent=1 // pred_check_branch
      %704 = sbr.rel (0) target = $region89
    $region88: #{gat2_forward.1} parent=1 // pred_region
      _
    $region89: #{gat2_forward.1} parent=1 // pred_fallthru
      _
    %705 = vsyncpa [#allocation3], 1
    %706 = vsyncpa [#allocation5], 1
    %707 = vsyncpa [#allocation8], 1
    %708 = vsyncpa [#allocation11], 1
    %709 = vsyncpa [#allocation14], 1

</llo_original>
